<compile_context>
chip_gen: v7x
topology: tpu7x:2x2x1
jax: 0.10.0
libtpu: 0.0.40
codegen_flags: <defaults>
</compile_context>

<pallas_src>
import functools
import math

import jax
import jax.numpy as jnp
from jax.experimental import pallas as pl
from jax.experimental.pallas import tpu as pltpu

LN_EPS = 1e-5
_INV_SQRT2 = 1.0 / math.sqrt(2.0)


def _round_up(x, m):
    return ((x + m - 1) // m) * m


def _device_kind():
    try:
        return jax.devices()[0].device_kind.lower()
    except Exception:
        return ""


def _vmem_capacity_bytes():
    """VMEM capacity; prefer the runtime query, else key off the device kind."""
    try:
        return int(pltpu.get_tpu_info().vmem_capacity_bytes)
    except Exception:
        pass
    return (64 << 20) if "v7" in _device_kind() else (128 << 20)


def _num_tensorcores():
    """2 TensorCores per device on v4 / v5p / v7x, else 1."""
    kind = _device_kind()
    return 2 if ("v7" in kind or "v4" in kind or "v5p" in kind) else 1


def _const_spec(shape):
    """BlockSpec for a resident (grid-invariant) operand; single-buffered."""
    idx = lambda i, k: (0, 0)
    try:
        return pl.BlockSpec(shape, idx, pipeline_mode=pl.Buffered(1))
    except TypeError:  # older jax without pipeline_mode: fall back to default buffering
        return pl.BlockSpec(shape, idx)


def _select_tiles(B, D_pad, H_pad, N_pad, vmem_cap, num_cores):
    """Pick (TB, TK).  TB (arithmetic intensity) first, then TK from VMEM headroom."""
    budget = int(vmem_cap * 0.55)

    def fixed_bytes(tb):
        return (H_pad * N_pad * 2            # w2 (bf16, single-buffered, resident)
                + (3 * H_pad + N_pad) * 4    # b1 / gamma / beta / b2 (f32, single-buffered)
                + tb * H_pad * 4             # f32 accumulator scratch
                + 2 * tb * N_pad * 4)        # output tile (f32, double-buffered)

    def tk_cap(tb):
        avail = budget - fixed_bytes(tb)
        per_tk = 4 * (tb + H_pad)            # x + w1 bf16 tiles, double-buffered
        return (max(0, avail) // per_tk) // 128 * 128

    # Batch tile: big (up to 512) for arithmetic intensity; keep nb >= num_cores so
    # the "parallel" axis actually shards across both TensorCores when B allows.
    if num_cores >= 2 and B >= 32:
        tb = min(512, _round_up(-(-B // num_cores), 16))
    else:
        tb = min(512, _round_up(max(B, 1), 16))
    tb = max(tb, 16)

    # Prefer shrinking TB before letting TK fall below ~512.
    while True:
        if tk_cap(tb) >= min(512, D_pad) or tb <= 16:
            break
        new_tb = max(16, _round_up(tb // 2, 16))
        if new_tb >= tb:
            break
        tb = new_tb

    cap = max(tk_cap(tb), 128)               # if even the fixed footprint is tight,
    max_tk = min(cap, 1024, D_pad)           # fall back to the smallest legal K tile
    tk = 128                                 # (D_pad is always a multiple of 128)
    t = 256
    while t <= max_tk:
        if D_pad % t == 0:                   # only divisors of the 128-padded D:
            tk = t                           # no TK-aligned zero columns streamed
        t += 128
    return tb, tk


def _blk_mlp_kernel(x_ref, w1_ref, b1_ref, gamma_ref, beta_ref, w2_ref, b2_ref,
                    o_ref, acc_ref, *, h_true):
    k = pl.program_id(1)

    # Linear-1 partial product: bf16 MXU, f32 accumulation.
    partial = jnp.dot(x_ref[...], w1_ref[...], preferred_element_type=jnp.float32)

    @pl.when(k == 0)
    def _():                                  # first K tile: write directly
        acc_ref[...] = partial                # (saves zero-init + read-modify-write)

    @pl.when(k > 0)
    def _():
        acc_ref[...] += partial

    @pl.when(k == pl.num_programs(1) - 1)
    def _():
        h = acc_ref[...] + b1_ref[...]        # (TB, H_pad); pad lanes are exactly 0
        inv_h = jnp.float32(1.0 / h_true)
        mean = jnp.sum(h, axis=-1, keepdims=True) * inv_h
        # Two-pass variance (matches PyTorch LayerNorm); mask the padded lanes so
        # (0 - mean)^2 from pad columns never pollutes the statistics.
        lane = jax.lax.broadcasted_iota(jnp.int32, h.shape, 1)
        centered = jnp.where(lane < h_true, h - mean, 0.0)
        var = jnp.sum(centered * centered, axis=-1, keepdims=True) * inv_h
        hn = centered * jax.lax.rsqrt(var + LN_EPS)
        hn = hn * gamma_ref[...] + beta_ref[...]   # gamma/beta pad = 0 keeps pads 0
        # Exact (erf-based) GELU, matching torch.nn.GELU default.
        g = 0.5 * hn * (1.0 + jax.lax.erf(hn * _INV_SQRT2))
        # Linear-2: bf16 MXU, f32 accumulation.
        out = jnp.dot(g.astype(w2_ref.dtype), w2_ref[...],
                      preferred_element_type=jnp.float32) + b2_ref[...]
        o_ref[...] = out.astype(o_ref.dtype)


def prepare_params(params):
    """One-time weight padding + bf16 cast (hoisted out of the per-call forward)."""
    w1, b1 = params["w1"], params["b1"]            # (D_in, H), (1, H)
    gamma, beta = params["gamma"], params["beta"]  # (1, H), (1, H)
    w2, b2 = params["w2"], params["b2"]            # (H, N), (1, N)
    D_in, H = w1.shape
    N = w2.shape[1]
    D_pad = _round_up(D_in, 128)
    H_pad = _round_up(H, 128)
    N_pad = _round_up(N, 128)
    bf16, f32 = jnp.bfloat16, jnp.float32
    return {
        "w1": jnp.zeros((D_pad, H_pad), bf16).at[:D_in, :H].set(w1.astype(bf16)),
        "b1": jnp.zeros((1, H_pad), f32).at[:, :H].set(b1.astype(f32)),
        "gamma": jnp.zeros((1, H_pad), f32).at[:, :H].set(gamma.astype(f32)),
        "beta": jnp.zeros((1, H_pad), f32).at[:, :H].set(beta.astype(f32)),
        "w2": jnp.zeros((H_pad, N_pad), bf16).at[:H, :N].set(w2.astype(bf16)),
        "b2": jnp.zeros((1, N_pad), f32).at[:, :N].set(b2.astype(f32)),
        "dims": (D_in, H, N, D_pad, H_pad, N_pad),
    }


def blk_mlp_forward(x, prepared):
    """x: (B, 2C, F) float32.  prepared: output of prepare_params.  Returns (B, N) f32."""
    B = x.shape[0]
    D_in, H, N, D_pad, H_pad, N_pad = prepared["dims"]
    x2d = x.reshape(B, -1)                         # (B, 2*C*F) — glue reshape in JAX
    assert x2d.shape[1] == D_in, (x2d.shape, D_in)

    vmem_cap = _vmem_capacity_bytes()
    TB, TK = _select_tiles(B, D_pad, H_pad, N_pad, vmem_cap, _num_tensorcores())
    B_pad = _round_up(B, TB)

    x_p = jnp.zeros((B_pad, D_pad), jnp.bfloat16).at[:B, :D_in].set(
        x2d.astype(jnp.bfloat16))

    nb = B_pad // TB
    nk = D_pad // TK

    out_p = pl.pallas_call(
        functools.partial(_blk_mlp_kernel, h_true=H),
        out_shape=jax.ShapeDtypeStruct((B_pad, N_pad), jnp.float32),
        grid_spec=pltpu.PrefetchScalarGridSpec(
            num_scalar_prefetch=0,
            grid=(nb, nk),
            in_specs=[
                pl.BlockSpec((TB, TK), lambda i, k: (i, k)),     # x  (streamed over K)
                pl.BlockSpec((TK, H_pad), lambda i, k: (k, 0)),  # w1 (streamed over K)
                _const_spec((1, H_pad)),                         # b1    (resident, 1-buffered)
                _const_spec((1, H_pad)),                         # gamma (resident, 1-buffered)
                _const_spec((1, H_pad)),                         # beta  (resident, 1-buffered)
                _const_spec((H_pad, N_pad)),                     # w2    (resident, 1-buffered)
                _const_spec((1, N_pad)),                         # b2    (resident, 1-buffered)
            ],
            out_specs=pl.BlockSpec((TB, N_pad), lambda i, k: (i, 0)),
            scratch_shapes=[pltpu.VMEM((TB, H_pad), jnp.float32)],
        ),
        compiler_params=pltpu.CompilerParams(
            dimension_semantics=("parallel", "arbitrary"),
            vmem_limit_bytes=int(vmem_cap * 0.75),
        ),
    )(x_p, prepared["w1"], prepared["b1"], prepared["gamma"],
      prepared["beta"], prepared["w2"], prepared["b2"])

    return out_p[:B, :N]


def init_params(key, C, F, N):
    """Deterministic parameter init mirroring the PyTorch module shapes."""
    D_in = 2 * C * F
    H = 6 * N
    k1, k2, k3, k4 = jax.random.split(key, 4)
    lim1 = 1.0 / math.sqrt(D_in)
    lim2 = 1.0 / math.sqrt(H)
    return {
        "w1": jax.random.uniform(k1, (D_in, H), jnp.float32, -lim1, lim1),
        "b1": jax.random.uniform(k2, (1, H), jnp.float32, -lim1, lim1),
        "gamma": jnp.ones((1, H), jnp.float32),
        "beta": jnp.zeros((1, H), jnp.float32),
        "w2": jax.random.uniform(k3, (H, N), jnp.float32, -lim2, lim2),
        "b2": jax.random.uniform(k4, (1, N), jnp.float32, -lim2, lim2),
    }


def _reference_f32(x, params):
    """Pure-f32 reference matching the PyTorch module."""
    B = x.shape[0]
    x2d = x.reshape(B, -1).astype(jnp.float32)
    h = x2d @ params["w1"] + params["b1"]
    mean = jnp.mean(h, axis=-1, keepdims=True)
    var = jnp.mean((h - mean) ** 2, axis=-1, keepdims=True)
    h = (h - mean) * jax.lax.rsqrt(var + LN_EPS)
    h = h * params["gamma"] + params["beta"]
    h = 0.5 * h * (1.0 + jax.lax.erf(h * _INV_SQRT2))
    return h @ params["w2"] + params["b2"]


def _reference_bf16(x, params):
    """Reference mirroring the kernel's bf16 quantization (math stays f32)."""
    B = x.shape[0]
    bf16 = jnp.bfloat16
    x2d = x.reshape(B, -1).astype(bf16).astype(jnp.float32)
    w1 = params["w1"].astype(bf16).astype(jnp.float32)
    w2 = params["w2"].astype(bf16).astype(jnp.float32)
    h = x2d @ w1 + params["b1"]
    mean = jnp.mean(h, axis=-1, keepdims=True)
    var = jnp.mean((h - mean) ** 2, axis=-1, keepdims=True)
    hn = (h - mean) * jax.lax.rsqrt(var + LN_EPS)
    hn = hn * params["gamma"] + params["beta"]
    g = 0.5 * hn * (1.0 + jax.lax.erf(hn * _INV_SQRT2))
    g = g.astype(bf16).astype(jnp.float32)
    return g @ w2 + params["b2"]


if __name__ == "__main__":
    # Small shapes consistent with the forward: x is (B, 2C, F)
    C, F, N = 4, 16, 8
    B = 2
    key = jax.random.PRNGKey(0)
    kx, kp = jax.random.split(key)
    x = jax.random.normal(kx, (B, 2 * C, F), jnp.float32)
    params = init_params(kp, C, F, N)

    prepared = prepare_params(params)              # one-time weight pad + bf16 cast
    out = jax.block_until_ready(blk_mlp_forward(x, prepared))
    assert out.shape == (B, N), out.shape

    # Tight check against a reference with identical bf16 quantization.
    ref_q = _reference_bf16(x, params)
    err_q = float(jnp.max(jnp.abs(out - ref_q)))
    assert jnp.allclose(out, ref_q, atol=5e-3, rtol=5e-3), err_q

    # Loose semantic check against the full-precision (PyTorch-equivalent) path.
    ref_full = _reference_f32(x, params)
    err_full = float(jnp.max(jnp.abs(out - ref_full)))
    assert jnp.allclose(out, ref_full, atol=1e-1, rtol=1e-1), err_full

    print("KERNEL_OK")
</pallas_src>

<mosaic_0001>
module attributes {stable_mosaic.version = 11 : i64} {
  func.func @_blk_mlp_kernel(%arg0: i32, %arg1: i32, %arg2: memref<16x128xbf16, #tpu.memory_space<vmem>>, %arg3: memref<128x128xbf16, #tpu.memory_space<vmem>>, %arg4: memref<1x128xf32, #tpu.memory_space<vmem>>, %arg5: memref<1x128xf32, #tpu.memory_space<vmem>>, %arg6: memref<1x128xf32, #tpu.memory_space<vmem>>, %arg7: memref<128x128xbf16, #tpu.memory_space<vmem>>, %arg8: memref<1x128xf32, #tpu.memory_space<vmem>>, %arg9: memref<16x128xf32, #tpu.memory_space<vmem>>, %arg10: memref<16x128xf32, #tpu.memory_space<vmem>>) attributes {dimension_semantics = [#tpu.dimension_semantics<parallel>, #tpu.dimension_semantics<arbitrary>], iteration_bounds = array<i64: 1, 1>, scalar_prefetch = 0 : i64, scratch_operands = 1 : i64, tpu.core_type = #tpu.core_type<tc>, window_params = [{transform_indices = @transform_0, window_bounds = array<i64: 16, 128>}, {transform_indices = @transform_1, window_bounds = array<i64: 128, 128>}, {pipeline_mode = #tpu.pipeline_mode<synchronous>, transform_indices = @transform_2, window_bounds = array<i64: 1, 128>}, {pipeline_mode = #tpu.pipeline_mode<synchronous>, transform_indices = @transform_3, window_bounds = array<i64: 1, 128>}, {pipeline_mode = #tpu.pipeline_mode<synchronous>, transform_indices = @transform_4, window_bounds = array<i64: 1, 128>}, {pipeline_mode = #tpu.pipeline_mode<synchronous>, transform_indices = @transform_5, window_bounds = array<i64: 128, 128>}, {pipeline_mode = #tpu.pipeline_mode<synchronous>, transform_indices = @transform_6, window_bounds = array<i64: 1, 128>}, {transform_indices = @transform_7, window_bounds = array<i64: 16, 128>}]} {
    %c0 = arith.constant 0 : index
    %c0_0 = arith.constant 0 : index
    %0 = vector.load %arg2[%c0, %c0_0] : memref<16x128xbf16, #tpu.memory_space<vmem>>, vector<16x128xbf16>
    %c0_1 = arith.constant 0 : index
    %c0_2 = arith.constant 0 : index
    %1 = vector.load %arg3[%c0_1, %c0_2] : memref<128x128xbf16, #tpu.memory_space<vmem>>, vector<128x128xbf16>
    %cst = arith.constant dense<0.000000e+00> : vector<16x128xf32>
    %2 = tpu.matmul %0, %1, %cst {dimension_numbers = #tpu.dot_dimension_numbers<[1], [0], [0], [1], [0, 0, 1, 1], [], []>} : vector<16x128xbf16>, vector<128x128xbf16>, vector<16x128xf32> -> vector<16x128xf32>
    %c0_i32 = arith.constant 0 : i32
    %3 = arith.cmpi eq, %arg1, %c0_i32 : i32
    %4 = arith.extui %3 : i1 to i32
    %c0_i32_3 = arith.constant 0 : i32
    %5 = arith.cmpi ne, %4, %c0_i32_3 : i32
    scf.if %5 {
      %c0_8 = arith.constant 0 : index
      %c0_9 = arith.constant 0 : index
      %12 = vector.load %arg10[%c0_8, %c0_9] : memref<16x128xf32, #tpu.memory_space<vmem>>, vector<16x128xf32>
      tpu.vector_store %arg10[%c0_8, %c0_9], %2 {strides = array<i32>} : memref<16x128xf32, #tpu.memory_space<vmem>>, vector<16x128xf32>,
    } else {
    }
    %c0_i32_4 = arith.constant 0 : i32
    %6 = arith.cmpi sgt, %arg1, %c0_i32_4 : i32
    %7 = arith.extui %6 : i1 to i32
    %c0_i32_5 = arith.constant 0 : i32
    %8 = arith.cmpi ne, %7, %c0_i32_5 : i32
    scf.if %8 {
      %c0_8 = arith.constant 0 : index
      %c0_9 = arith.constant 0 : index
      %12 = vector.load %arg10[%c0_8, %c0_9] : memref<16x128xf32, #tpu.memory_space<vmem>>, vector<16x128xf32>
      %13 = arith.addf %12, %2 : vector<16x128xf32>
      %c0_10 = arith.constant 0 : index
      %c0_11 = arith.constant 0 : index
      %14 = vector.load %arg10[%c0_10, %c0_11] : memref<16x128xf32, #tpu.memory_space<vmem>>, vector<16x128xf32>
      tpu.vector_store %arg10[%c0_10, %c0_11], %13 {strides = array<i32>} : memref<16x128xf32, #tpu.memory_space<vmem>>, vector<16x128xf32>,
    } else {
    }
    %c0_i32_6 = arith.constant 0 : i32
    %9 = arith.cmpi eq, %arg1, %c0_i32_6 : i32
    %10 = arith.extui %9 : i1 to i32
    %c0_i32_7 = arith.constant 0 : i32
    %11 = arith.cmpi ne, %10, %c0_i32_7 : i32
    scf.if %11 {
      %c0_8 = arith.constant 0 : index
      %c0_9 = arith.constant 0 : index
      %12 = vector.load %arg10[%c0_8, %c0_9] : memref<16x128xf32, #tpu.memory_space<vmem>>, vector<16x128xf32>
      %c0_10 = arith.constant 0 : index
      %c0_11 = arith.constant 0 : index
      %13 = vector.load %arg4[%c0_10, %c0_11] : memref<1x128xf32, #tpu.memory_space<vmem>>, vector<1x128xf32>
      %14 = vector.broadcast %13 : vector<1x128xf32> to vector<16x128xf32>
      %15 = arith.addf %12, %14 : vector<16x128xf32>
      %cst_12 = arith.constant dense<0.000000e+00> : vector<16xf32>
      %16 = vector.multi_reduction <add>, %15, %cst_12 [1] : vector<16x128xf32> to vector<16xf32>
      %17 = vector.shape_cast %16 : vector<16xf32> to vector<16x1xf32>
      %cst_13 = arith.constant 0.020833334 : f32
      %18 = vector.broadcast %cst_13 : f32 to vector<16x1xf32>
      %19 = arith.mulf %17, %18 : vector<16x1xf32>
      %20 = tpu.iota {dimensions = array<i32: 1>} : vector<16x128xi32>
      %c48_i32 = arith.constant 48 : i32
      %21 = vector.broadcast %c48_i32 : i32 to vector<16x128xi32>
      %22 = arith.cmpi slt, %20, %21 : vector<16x128xi32>
      %23 = vector.broadcast %19 : vector<16x1xf32> to vector<16x128xf32>
      %24 = arith.subf %15, %23 : vector<16x128xf32>
      %cst_14 = arith.constant 0.000000e+00 : f32
      %25 = vector.broadcast %cst_14 : f32 to vector<16x128xf32>
      %26 = arith.select %22, %24, %25 : vector<16x128xi1>, vector<16x128xf32>
      %27 = arith.mulf %26, %26 : vector<16x128xf32>
      %cst_15 = arith.constant dense<0.000000e+00> : vector<16xf32>
      %28 = vector.multi_reduction <add>, %27, %cst_15 [1] : vector<16x128xf32> to vector<16xf32>
      %29 = vector.shape_cast %28 : vector<16xf32> to vector<16x1xf32>
      %cst_16 = arith.constant 0.020833334 : f32
      %30 = vector.broadcast %cst_16 : f32 to vector<16x1xf32>
      %31 = arith.mulf %29, %30 : vector<16x1xf32>
      %cst_17 = arith.constant 9.99999974E-6 : f32
      %32 = vector.broadcast %cst_17 : f32 to vector<16x1xf32>
      %33 = arith.addf %31, %32 : vector<16x1xf32>
      %34 = math.rsqrt %33 : vector<16x1xf32>
      %35 = vector.broadcast %34 : vector<16x1xf32> to vector<16x128xf32>
      %36 = arith.mulf %26, %35 : vector<16x128xf32>
      %c0_18 = arith.constant 0 : index
      %c0_19 = arith.constant 0 : index
      %37 = vector.load %arg5[%c0_18, %c0_19] : memref<1x128xf32, #tpu.memory_space<vmem>>, vector<1x128xf32>
      %38 = vector.broadcast %37 : vector<1x128xf32> to vector<16x128xf32>
      %39 = arith.mulf %36, %38 : vector<16x128xf32>
      %c0_20 = arith.constant 0 : index
      %c0_21 = arith.constant 0 : index
      %40 = vector.load %arg6[%c0_20, %c0_21] : memref<1x128xf32, #tpu.memory_space<vmem>>, vector<1x128xf32>
      %41 = vector.broadcast %40 : vector<1x128xf32> to vector<16x128xf32>
      %42 = arith.addf %39, %41 : vector<16x128xf32>
      %cst_22 = arith.constant 5.000000e-01 : f32
      %43 = vector.broadcast %cst_22 : f32 to vector<16x128xf32>
      %44 = arith.mulf %43, %42 : vector<16x128xf32>
      %cst_23 = arith.constant 0.707106769 : f32
      %45 = vector.broadcast %cst_23 : f32 to vector<16x128xf32>
      %46 = arith.mulf %42, %45 : vector<16x128xf32>
      %47 = math.erf %46 : vector<16x128xf32>
      %cst_24 = arith.constant 1.000000e+00 : f32
      %48 = vector.broadcast %cst_24 : f32 to vector<16x128xf32>
      %49 = arith.addf %48, %47 : vector<16x128xf32>
      %50 = arith.mulf %44, %49 : vector<16x128xf32>
      %51 = arith.truncf %50 : vector<16x128xf32> to vector<16x128xbf16>
      %c0_25 = arith.constant 0 : index
      %c0_26 = arith.constant 0 : index
      %52 = vector.load %arg7[%c0_25, %c0_26] : memref<128x128xbf16, #tpu.memory_space<vmem>>, vector<128x128xbf16>
      %cst_27 = arith.constant dense<0.000000e+00> : vector<16x128xf32>
      %53 = tpu.matmul %51, %52, %cst_27 {dimension_numbers = #tpu.dot_dimension_numbers<[1], [0], [0], [1], [0, 0, 1, 1], [], []>} : vector<16x128xbf16>, vector<128x128xbf16>, vector<16x128xf32> -> vector<16x128xf32>
      %c0_28 = arith.constant 0 : index
      %c0_29 = arith.constant 0 : index
      %54 = vector.load %arg8[%c0_28, %c0_29] : memref<1x128xf32, #tpu.memory_space<vmem>>, vector<1x128xf32>
      %55 = vector.broadcast %54 : vector<1x128xf32> to vector<16x128xf32>
      %56 = arith.addf %53, %55 : vector<16x128xf32>
      %c0_30 = arith.constant 0 : index
      %c0_31 = arith.constant 0 : index
      %57 = vector.load %arg9[%c0_30, %c0_31] : memref<16x128xf32, #tpu.memory_space<vmem>>, vector<16x128xf32>
      tpu.vector_store %arg9[%c0_30, %c0_31], %56 {strides = array<i32>} : memref<16x128xf32, #tpu.memory_space<vmem>>, vector<16x128xf32>,
    } else {
    }
    return
  }
  func.func @transform_0(%arg0: i32, %arg1: i32) -> (i32, i32) {
    %c0_i32 = arith.constant 0 : i32
    return %arg0, %arg1 : i32, i32
  }
  func.func @transform_1(%arg0: i32, %arg1: i32) -> (i32, i32) {
    %c0_i32 = arith.constant 0 : i32
    %c0_i32_0 = arith.constant 0 : i32
    return %arg1, %c0_i32 : i32, i32
  }
  func.func @transform_2(%arg0: i32, %arg1: i32) -> (i32, i32) {
    %c0_i32 = arith.constant 0 : i32
    %c0_i32_0 = arith.constant 0 : i32
    %c0_i32_1 = arith.constant 0 : i32
    return %c0_i32, %c0_i32_0 : i32, i32
  }
  func.func @transform_3(%arg0: i32, %arg1: i32) -> (i32, i32) {
    %c0_i32 = arith.constant 0 : i32
    %c0_i32_0 = arith.constant 0 : i32
    %c0_i32_1 = arith.constant 0 : i32
    return %c0_i32, %c0_i32_0 : i32, i32
  }
  func.func @transform_4(%arg0: i32, %arg1: i32) -> (i32, i32) {
    %c0_i32 = arith.constant 0 : i32
    %c0_i32_0 = arith.constant 0 : i32
    %c0_i32_1 = arith.constant 0 : i32
    return %c0_i32, %c0_i32_0 : i32, i32
  }
  func.func @transform_5(%arg0: i32, %arg1: i32) -> (i32, i32) {
    %c0_i32 = arith.constant 0 : i32
    %c0_i32_0 = arith.constant 0 : i32
    %c0_i32_1 = arith.constant 0 : i32
    return %c0_i32, %c0_i32_0 : i32, i32
  }
  func.func @transform_6(%arg0: i32, %arg1: i32) -> (i32, i32) {
    %c0_i32 = arith.constant 0 : i32
    %c0_i32_0 = arith.constant 0 : i32
    %c0_i32_1 = arith.constant 0 : i32
    return %c0_i32, %c0_i32_0 : i32, i32
  }
  func.func @transform_7(%arg0: i32, %arg1: i32) -> (i32, i32) {
    %c0_i32 = arith.constant 0 : i32
    %c0_i32_0 = arith.constant 0 : i32
    return %arg0, %c0_i32 : i32, i32
  }
}

</mosaic_0001>

<llo_original>
// kernel: tpu_custom_call.1
$region0: #{tpu_custom_call.1}
  #allocation0 [shape = 'u32[]', space=smem, size = 0x4, offset = 0x4, fixed_abs, tag = 'smem constant byte address 0x4 - core index']
  #allocation1 [shape = 'u32[144,128]{1,0:T(1,128)}', space=vmem, size = 0x12000, scoped, tag = 'internal scratch']
  #allocation2 [shape = 'f32[16,128]{1,0:T(8,128)}', space=vmem, size = 0x2000, scoped, tag = 'scratch operand']
  %s0 = inlined_call_operand.hbm [shape: bf16[16,128], index: 0, kind: input, shape index: {}]
  %s1 = inlined_call_operand.hbm [shape: bf16[128,128], index: 1, kind: input, shape index: {}]
  %s2 = inlined_call_operand.hbm [shape: f32[1,128], index: 2, kind: input, shape index: {}]
  %s3 = inlined_call_operand.hbm [shape: f32[1,128], index: 3, kind: input, shape index: {}]
  %s4 = inlined_call_operand.hbm [shape: f32[1,128], index: 4, kind: input, shape index: {}]
  %s5 = inlined_call_operand.hbm [shape: bf16[128,128], index: 5, kind: input, shape index: {}]
  %s6 = inlined_call_operand.hbm [shape: f32[1,128], index: 6, kind: input, shape index: {}]
  %s7 = inlined_call_operand.hbm [shape: f32[16,128], index: 7, kind: output, shape index: {}]
  %s8 = sld [smem:[#allocation0]]
  $region78: #{tpu_custom_call.1} parent=0
    _
  %s10 = ssub.s32 1, %s8
  %s11 = scalar_select 0, %s10, %s8
  $region1: #{tpu_custom_call.1} parent=0
    #allocation3 [shape = 'u8[4096]{0}', space=vmem, size = 0x1000, scoped, tag = 'input window, operand 0, single buffered']
    #allocation4 [shape = 's32[1]{0}', space=sflag, size = 0x4, scoped, tag = 'scoped memory for tpu_custom_call.1']
    #allocation5 [shape = 's32[1]{0}', space=sflag, size = 0x4, scoped, tag = 'scoped memory for tpu_custom_call.1']
    #allocation6 [shape = 'u8[32768]{0}', space=vmem, size = 0x8000, scoped, tag = 'input window, operand 1, single buffered']
    #allocation7 [shape = 's32[1]{0}', space=sflag, size = 0x4, scoped, tag = 'scoped memory for tpu_custom_call.1']
    #allocation8 [shape = 'u8[512]{0}', space=vmem, size = 0x400, scoped, tag = 'input window, operand 2, single buffered']
    #allocation9 [shape = 'u8[512]{0}', space=vmem, size = 0x400, scoped, tag = 'input window, operand 3, single buffered']
    #allocation10 [shape = 's32[1]{0}', space=sflag, size = 0x4, scoped, tag = 'scoped memory for tpu_custom_call.1']
    #allocation11 [shape = 'u8[512]{0}', space=vmem, size = 0x400, scoped, tag = 'input window, operand 4, single buffered']
    #allocation12 [shape = 'u8[32768]{0}', space=vmem, size = 0x8000, scoped, tag = 'input window, operand 5, single buffered']
    #allocation13 [shape = 's32[1]{0}', space=sflag, size = 0x4, scoped, tag = 'scoped memory for tpu_custom_call.1']
    #allocation14 [shape = 'u8[512]{0}', space=vmem, size = 0x400, scoped, tag = 'input window, operand 6, single buffered']
    #allocation15 [shape = 'u8[8192]{0}', space=vmem, size = 0x2000, scoped, tag = 'output window, operand 0, single buffered']
    %12 = vsyncpa [#allocation4], 0
    %13 = vsyncpa [#allocation7], 0
    %14 = vsyncpa [#allocation10], 0
    %15 = vsyncpa [#allocation13], 0
    %16 = vsyncpa [#allocation5], 0
    // Predicated region
    $region2: #{tpu_custom_call.1} parent=1 // pred_check
      _
    $region3: #{tpu_custom_call.1} parent=1 // pred_check_branch
      %18 = sbr.rel (0) target = $region5
    $region4: #{tpu_custom_call.1} parent=1 // pred_region
      %s20 = ssub.s32 128, 128
      %21 = vsyncadd [#allocation4], %s20
      %s22 = sshll.u32 [#allocation3], 4
      %s23 = int_to_ptr.vmem [resolvable:$true] %s22
      %28 = dma.hbm_to_vmem [thread:$0]  %s0, 128, %s23, [#allocation4], 64, 64, 4
    $region5: #{tpu_custom_call.1} parent=1 // pred_fallthru
      _
    // Predicated region
    $region6: #{tpu_custom_call.1} parent=1 // pred_check
      _
    $region7: #{tpu_custom_call.1} parent=1 // pred_check_branch
      %30 = sbr.rel (0) target = $region9
    $region8: #{tpu_custom_call.1} parent=1 // pred_region
      %s32 = ssub.s32 1024, 1024
      %33 = vsyncadd [#allocation7], %s32
      %s34 = sshll.u32 [#allocation6], 4
      %s35 = int_to_ptr.vmem [resolvable:$true] %s34
      %40 = dma.hbm_to_vmem [thread:$0]  %s1, 1024, %s35, [#allocation7], 64, 64, 4
    $region9: #{tpu_custom_call.1} parent=1 // pred_fallthru
      _
    // Predicated region
    $region10: #{tpu_custom_call.1} parent=1 // pred_check
      _
    $region11: #{tpu_custom_call.1} parent=1 // pred_check_branch
      %42 = sbr.rel (0) target = $region13
    $region12: #{tpu_custom_call.1} parent=1 // pred_region
      %s44 = ssub.s32 16, 16
      %45 = vsyncadd [#allocation7], %s44
      %s47 = sshll.u32 [#allocation8], 4
      %s48 = int_to_ptr.vmem [resolvable:$true] %s47
      %50 = dma.hbm_to_vmem [thread:$0]  %s2, 16, %s48, [#allocation7]
    $region13: #{tpu_custom_call.1} parent=1 // pred_fallthru
      _
    // Predicated region
    $region14: #{tpu_custom_call.1} parent=1 // pred_check
      _
    $region15: #{tpu_custom_call.1} parent=1 // pred_check_branch
      %52 = sbr.rel (0) target = $region17
    $region16: #{tpu_custom_call.1} parent=1 // pred_region
      %s54 = ssub.s32 16, 16
      %55 = vsyncadd [#allocation10], %s54
      %s57 = sshll.u32 [#allocation9], 4
      %s58 = int_to_ptr.vmem [resolvable:$true] %s57
      %60 = dma.hbm_to_vmem [thread:$0]  %s3, 16, %s58, [#allocation10]
    $region17: #{tpu_custom_call.1} parent=1 // pred_fallthru
      _
    // Predicated region
    $region18: #{tpu_custom_call.1} parent=1 // pred_check
      _
    $region19: #{tpu_custom_call.1} parent=1 // pred_check_branch
      %62 = sbr.rel (0) target = $region21
    $region20: #{tpu_custom_call.1} parent=1 // pred_region
      %s64 = ssub.s32 16, 16
      %65 = vsyncadd [#allocation10], %s64
      %s67 = sshll.u32 [#allocation11], 4
      %s68 = int_to_ptr.vmem [resolvable:$true] %s67
      %70 = dma.hbm_to_vmem [thread:$0]  %s4, 16, %s68, [#allocation10]
    $region21: #{tpu_custom_call.1} parent=1 // pred_fallthru
      _
    // Predicated region
    $region22: #{tpu_custom_call.1} parent=1 // pred_check
      _
    $region23: #{tpu_custom_call.1} parent=1 // pred_check_branch
      %72 = sbr.rel (0) target = $region25
    $region24: #{tpu_custom_call.1} parent=1 // pred_region
      %s74 = ssub.s32 1024, 1024
      %75 = vsyncadd [#allocation13], %s74
      %s76 = sshll.u32 [#allocation12], 4
      %s77 = int_to_ptr.vmem [resolvable:$true] %s76
      %82 = dma.hbm_to_vmem [thread:$0]  %s5, 1024, %s77, [#allocation13], 64, 64, 4
    $region25: #{tpu_custom_call.1} parent=1 // pred_fallthru
      _
    // Predicated region
    $region26: #{tpu_custom_call.1} parent=1 // pred_check
      _
    $region27: #{tpu_custom_call.1} parent=1 // pred_check_branch
      %84 = sbr.rel (0) target = $region29
    $region28: #{tpu_custom_call.1} parent=1 // pred_region
      %s86 = ssub.s32 16, 16
      %87 = vsyncadd [#allocation13], %s86
      %s89 = sshll.u32 [#allocation14], 4
      %s90 = int_to_ptr.vmem [resolvable:$true] %s89
      %92 = dma.hbm_to_vmem [thread:$0]  %s6, 16, %s90, [#allocation13]
    $region29: #{tpu_custom_call.1} parent=1 // pred_fallthru
      _
    // Predicated region
    $region30: #{tpu_custom_call.1} parent=1 // pred_check
      _
    $region31: #{tpu_custom_call.1} parent=1 // pred_check_branch
      %94 = sbr.rel (0) target = $region33
    $region32: #{tpu_custom_call.1} parent=1 // pred_region
      %95 = dma.done [#allocation4], 128
    $region33: #{tpu_custom_call.1} parent=1 // pred_fallthru
      _
    // Predicated region
    $region34: #{tpu_custom_call.1} parent=1 // pred_check
      _
    $region35: #{tpu_custom_call.1} parent=1 // pred_check_branch
      %97 = sbr.rel (0) target = $region37
    $region36: #{tpu_custom_call.1} parent=1 // pred_region
      %98 = dma.done [#allocation7], 1024
    $region37: #{tpu_custom_call.1} parent=1 // pred_fallthru
      _
    // Predicated region
    $region38: #{tpu_custom_call.1} parent=1 // pred_check
      _
    $region39: #{tpu_custom_call.1} parent=1 // pred_check_branch
      %100 = sbr.rel (0) target = $region41
    $region40: #{tpu_custom_call.1} parent=1 // pred_region
      %101 = dma.done [#allocation7], 16
    $region41: #{tpu_custom_call.1} parent=1 // pred_fallthru
      _
    // Predicated region
    $region42: #{tpu_custom_call.1} parent=1 // pred_check
      _
    $region43: #{tpu_custom_call.1} parent=1 // pred_check_branch
      %103 = sbr.rel (0) target = $region45
    $region44: #{tpu_custom_call.1} parent=1 // pred_region
      %104 = dma.done [#allocation10], 16
    $region45: #{tpu_custom_call.1} parent=1 // pred_fallthru
      _
    // Predicated region
    $region46: #{tpu_custom_call.1} parent=1 // pred_check
      _
    $region47: #{tpu_custom_call.1} parent=1 // pred_check_branch
      %106 = sbr.rel (0) target = $region49
    $region48: #{tpu_custom_call.1} parent=1 // pred_region
      %107 = dma.done [#allocation10], 16
    $region49: #{tpu_custom_call.1} parent=1 // pred_fallthru
      _
    // Predicated region
    $region50: #{tpu_custom_call.1} parent=1 // pred_check
      _
    $region51: #{tpu_custom_call.1} parent=1 // pred_check_branch
      %109 = sbr.rel (0) target = $region53
    $region52: #{tpu_custom_call.1} parent=1 // pred_region
      %110 = dma.done [#allocation13], 1024
    $region53: #{tpu_custom_call.1} parent=1 // pred_fallthru
      _
    // Predicated region
    $region54: #{tpu_custom_call.1} parent=1 // pred_check
      _
    $region55: #{tpu_custom_call.1} parent=1 // pred_check_branch
      %112 = sbr.rel (0) target = $region57
    $region56: #{tpu_custom_call.1} parent=1 // pred_region
      %113 = dma.done [#allocation13], 16
    $region57: #{tpu_custom_call.1} parent=1 // pred_fallthru
      _
    %v115 = vld [vmem:[#allocation3] sm:$0xf]
    %v116 = vld [vmem:[#allocation3 + $0x4] sm:$0xf]
    %v117 = vld [vmem:[#allocation6] sm:$0xf]
    %v118 = vld [vmem:[#allocation6 + $0x4] sm:$0xf]
    %v119 = vld [vmem:[#allocation6 + $0x8] sm:$0xf]
    %v120 = vld [vmem:[#allocation6 + $0xc] sm:$0xf]
    %v121 = vld [vmem:[#allocation6 + $0x10] sm:$0xf]
    %v122 = vld [vmem:[#allocation6 + $0x14] sm:$0xf]
    %v123 = vld [vmem:[#allocation6 + $0x18] sm:$0xf]
    %v124 = vld [vmem:[#allocation6 + $0x1c] sm:$0xf]
    %v125 = vld [vmem:[#allocation6 + $0x20] sm:$0xf]
    %v126 = vld [vmem:[#allocation6 + $0x24] sm:$0xf]
    %v127 = vld [vmem:[#allocation6 + $0x28] sm:$0xf]
    %v128 = vld [vmem:[#allocation6 + $0x2c] sm:$0xf]
    %v129 = vld [vmem:[#allocation6 + $0x30] sm:$0xf]
    %v130 = vld [vmem:[#allocation6 + $0x34] sm:$0xf]
    %v131 = vld [vmem:[#allocation6 + $0x38] sm:$0xf]
    %v132 = vld [vmem:[#allocation6 + $0x3c] sm:$0xf]
    %v135 = vunpack.c.l.b16 %v115
    %v136 = vunpack.c.l.b16 %v116
    %v137 = vpack.c.b16 %v136, %v135
    %v155 = vunpack.c.l.b16 %v117
    %v156 = vunpack.c.l.b16 %v118
    %v157 = vunpack.c.l.b16 %v119
    %v158 = vunpack.c.l.b16 %v120
    %v159 = vunpack.c.l.b16 %v121
    %v160 = vunpack.c.l.b16 %v122
    %v161 = vunpack.c.l.b16 %v123
    %v162 = vunpack.c.l.b16 %v124
    %v163 = vunpack.c.l.b16 %v125
    %v164 = vunpack.c.l.b16 %v126
    %v165 = vunpack.c.l.b16 %v127
    %v166 = vunpack.c.l.b16 %v128
    %v167 = vunpack.c.l.b16 %v129
    %v168 = vunpack.c.l.b16 %v130
    %v169 = vunpack.c.l.b16 %v131
    %v170 = vunpack.c.l.b16 %v132
    %v171 = vpack.c.b16 %v156, %v155
    %v172 = vpack.c.b16 %v158, %v157
    %v173 = vpack.c.b16 %v160, %v159
    %v174 = vpack.c.b16 %v162, %v161
    %v175 = vpack.c.b16 %v164, %v163
    %v176 = vpack.c.b16 %v166, %v165
    %v177 = vpack.c.b16 %v168, %v167
    %v178 = vpack.c.b16 %v170, %v169
    %187 = vmatprep.subr.bf16.mxu0 0
    %188 = vmatpush1.bf16.msra.mxu0 %v171
    %189 = vmatprep.subr.bf16.mxu0 0
    %190 = vmatpush1.bf16.msra.mxu0 %v172
    %191 = vmatprep.subr.bf16.mxu0 0
    %192 = vmatpush1.bf16.msra.mxu0 %v173
    %193 = vmatprep.subr.bf16.mxu0 0
    %194 = vmatpush1.bf16.msra.mxu0 %v174
    %195 = vmatprep.subr.bf16.mxu0 0
    %196 = vmatpush1.bf16.msra.mxu0 %v175
    %197 = vmatprep.subr.bf16.mxu0 0
    %198 = vmatpush1.bf16.msra.mxu0 %v176
    %199 = vmatprep.subr.bf16.mxu0 0
    %200 = vmatpush1.bf16.msra.mxu0 %v177
    %201 = vmatprep.subr.bf16.mxu0 0
    %202 = vmatpush1.bf16.msra.mxu0 %v178
    %203 = vmatprep.subr.bf16.mxu0 0
    %204 = vmatpush1.bf16.msra.mxu0 0
    %205 = vmatprep.subr.bf16.mxu0 0
    %206 = vmatpush1.bf16.msra.mxu0 0
    %207 = vmatprep.subr.bf16.mxu0 0
    %208 = vmatpush1.bf16.msra.mxu0 0
    %209 = vmatprep.subr.bf16.mxu0 0
    %210 = vmatpush1.bf16.msra.mxu0 0
    %211 = vmatprep.subr.bf16.mxu0 0
    %212 = vmatpush1.bf16.msra.mxu0 0
    %213 = vmatprep.subr.bf16.mxu0 0
    %214 = vmatpush1.bf16.msra.mxu0 0
    %215 = vmatprep.subr.bf16.mxu0 0
    %216 = vmatpush1.bf16.msra.mxu0 0
    %217 = vmatprep.subr.bf16.mxu0 0
    %218 = vmatpush1.bf16.msra.mxu0 0
    %219 = vmatprep.mubr.bf16.mxu0 0
    %220 = vmatmul.mubr.bf16.gmra.mrb[0].mxu0 %v137
    %v221 = vpop.f32.mrb[0].mxu0
    %v222 = vadd.f32 0.0, %v221
    %v223 = vpop.f32.mrb[0].mxu0
    %v224 = vpop.f32.mrb[0].mxu0
    %v225 = vadd.f32 0.0, %v224
    %v226 = vpop.f32.mrb[0].mxu0
    %227 = vdwg.mxu0
    %p228 = scmp.eq.s32.totalorder 0, 0
    // Predicated region
    $region58: #{tpu_custom_call.1} parent=1 // pred_check
      %p229 = pneg %p228
    $region59: #{tpu_custom_call.1} parent=1 // pred_check_branch
      %231 = sbr.rel (%p229) target = $region61
    $region60: #{tpu_custom_call.1} parent=1 // pred_region
      %232 = vst [vmem:[#allocation2] sm:$0xff] %v222
      %233 = vst [vmem:[#allocation2 + $0x8] sm:$0xff] %v225
    $region61: #{tpu_custom_call.1} parent=1 // pred_fallthru
      _
    %p234 = scmp.gt.s32.totalorder 0, 0
    // Predicated region
    $region62: #{tpu_custom_call.1} parent=1 // pred_check
      %p235 = pneg %p234
    $region63: #{tpu_custom_call.1} parent=1 // pred_check_branch
      %237 = sbr.rel (%p235) target = $region65
    $region64: #{tpu_custom_call.1} parent=1 // pred_region
      %v238 = vld [vmem:[#allocation2] sm:$0xff]
      %v239 = vld [vmem:[#allocation2 + $0x8] sm:$0xff]
      %v240 = vadd.f32 %v238, %v222
      %v241 = vadd.f32 %v239, %v225
      %242 = vst [vmem:[#allocation2] sm:$0xff] %v240
      %243 = vst [vmem:[#allocation2 + $0x8] sm:$0xff] %v241
    $region65: #{tpu_custom_call.1} parent=1 // pred_fallthru
      _
    // Predicated region
    $region66: #{tpu_custom_call.1} parent=1 // pred_check
      %p244 = pneg %p228
    $region67: #{tpu_custom_call.1} parent=1 // pred_check_branch
      %246 = sbr.rel (%p244) target = $region69
    $region68: #{tpu_custom_call.1} parent=1 // pred_region
      %v247 = vld [vmem:[#allocation2] sm:$0xff]
      %v248 = vld [vmem:[#allocation2 + $0x8] sm:$0xff]
      %v249 = vld [vmem:[#allocation8] sm:$0x1]
      %v251 = vlaneseq
      %v252 = vshrl.u32 %v251, 7
      %v253 = vsub.s32 0, %v252
      %v254 = vrot.slane %v249, %v253
      %v256 = vadd.f32 %v247, %v254
      %v257 = vadd.f32 %v248, %v254
      %258 = vadd.xlane.f32.xlu0 %v256
      %v259 = vpop.xlane.xlu0 %258
      %260 = vadd.xlane.f32.xlu0 %v257
      %v261 = vpop.xlane.xlu0 %260
      %v262 = vmul.f32 %v259, 0.020833334
      %v263 = vmul.f32 %v261, 0.020833334
      %v264 = vlaneseq
      %v265 = vand.u32 %v264, 127
      %vm266 = vcmp.lt.s32.totalorder %v265, 48
      %v267 = vsub.f32 %v256, %v262
      %v268 = vsub.f32 %v257, %v263
      %v269 = vsel %vm266, %v267, 0.0
      %v270 = vsel %vm266, %v268, 0.0
      %v271 = vmul.f32 %v269, %v269
      %v272 = vmul.f32 %v270, %v270
      %273 = vadd.xlane.f32.xlu0 %v271
      %v274 = vpop.xlane.xlu0 %273
      %275 = vadd.xlane.f32.xlu0 %v272
      %v276 = vpop.xlane.xlu0 %275
      %v277 = vmul.f32 %v274, 0.020833334
      %v278 = vmul.f32 %v276, 0.020833334
      %v279 = vadd.f32 %v277, 1e-05
      %v280 = vadd.f32 %v278, 1e-05
      %v281 = vrsqrt.pop %v279
      %v282 = vrsqrt.pop %v280
      %v283 = vmul.f32 %v269, %v281
      %v284 = vmul.f32 %v270, %v282
      %v285 = vld [vmem:[#allocation9] sm:$0x1]
      %v287 = vlaneseq
      %v288 = vshrl.u32 %v287, 7
      %v289 = vsub.s32 0, %v288
      %v290 = vrot.slane %v285, %v289
      %v292 = vmul.f32 %v283, %v290
      %v293 = vmul.f32 %v284, %v290
      %v294 = vld [vmem:[#allocation11] sm:$0x1]
      %v296 = vlaneseq
      %v297 = vshrl.u32 %v296, 7
      %v298 = vsub.s32 0, %v297
      %v299 = vrot.slane %v294, %v298
      %v301 = vadd.f32 %v292, %v299
      %v302 = vadd.f32 %v293, %v299
      %v303 = vmul.f32 %v301, 0.5
      %v304 = vmul.f32 %v302, 0.5
      %v305 = vmul.f32 %v301, 0.70710677
      %v306 = vmul.f32 %v302, 0.70710677
      %v307 = verf.f32.pop %v305
      %v308 = verf.f32.pop %v306
      %v309 = vadd.f32 %v307, 1.0
      %v310 = vadd.f32 %v308, 1.0
      %v311 = vmul.f32 %v303, %v309
      %v312 = vmul.f32 %v304, %v310
      %v313 = vpack.c.bf16 %v312, %v311
      %v314 = vld [vmem:[#allocation12] sm:$0xf]
      %v315 = vld [vmem:[#allocation12 + $0x4] sm:$0xf]
      %v316 = vld [vmem:[#allocation12 + $0x8] sm:$0xf]
      %v317 = vld [vmem:[#allocation12 + $0xc] sm:$0xf]
      %v318 = vld [vmem:[#allocation12 + $0x10] sm:$0xf]
      %v319 = vld [vmem:[#allocation12 + $0x14] sm:$0xf]
      %v320 = vld [vmem:[#allocation12 + $0x18] sm:$0xf]
      %v321 = vld [vmem:[#allocation12 + $0x1c] sm:$0xf]
      %v322 = vld [vmem:[#allocation12 + $0x20] sm:$0xf]
      %v323 = vld [vmem:[#allocation12 + $0x24] sm:$0xf]
      %v324 = vld [vmem:[#allocation12 + $0x28] sm:$0xf]
      %v325 = vld [vmem:[#allocation12 + $0x2c] sm:$0xf]
      %v326 = vld [vmem:[#allocation12 + $0x30] sm:$0xf]
      %v327 = vld [vmem:[#allocation12 + $0x34] sm:$0xf]
      %v328 = vld [vmem:[#allocation12 + $0x38] sm:$0xf]
      %v329 = vld [vmem:[#allocation12 + $0x3c] sm:$0xf]
      %v330 = vld [vmem:[#allocation14] sm:$0x1]
      %v332 = vlaneseq
      %v333 = vshrl.u32 %v332, 7
      %v334 = vsub.s32 0, %v333
      %v335 = vrot.slane %v330, %v334
      %v353 = vunpack.c.l.b16 %v314
      %v354 = vunpack.c.l.b16 %v315
      %v355 = vunpack.c.l.b16 %v316
      %v356 = vunpack.c.l.b16 %v317
      %v357 = vunpack.c.l.b16 %v318
      %v358 = vunpack.c.l.b16 %v319
      %v359 = vunpack.c.l.b16 %v320
      %v360 = vunpack.c.l.b16 %v321
      %v361 = vunpack.c.l.b16 %v322
      %v362 = vunpack.c.l.b16 %v323
      %v363 = vunpack.c.l.b16 %v324
      %v364 = vunpack.c.l.b16 %v325
      %v365 = vunpack.c.l.b16 %v326
      %v366 = vunpack.c.l.b16 %v327
      %v367 = vunpack.c.l.b16 %v328
      %v368 = vunpack.c.l.b16 %v329
      %v369 = vpack.c.b16 %v354, %v353
      %v370 = vpack.c.b16 %v356, %v355
      %v371 = vpack.c.b16 %v358, %v357
      %v372 = vpack.c.b16 %v360, %v359
      %v373 = vpack.c.b16 %v362, %v361
      %v374 = vpack.c.b16 %v364, %v363
      %v375 = vpack.c.b16 %v366, %v365
      %v376 = vpack.c.b16 %v368, %v367
      %385 = vmatprep.subr.bf16.mxu0 0
      %386 = vmatpush1.bf16.msra.mxu0 %v369
      %387 = vmatprep.subr.bf16.mxu0 0
      %388 = vmatpush1.bf16.msra.mxu0 %v370
      %389 = vmatprep.subr.bf16.mxu0 0
      %390 = vmatpush1.bf16.msra.mxu0 %v371
      %391 = vmatprep.subr.bf16.mxu0 0
      %392 = vmatpush1.bf16.msra.mxu0 %v372
      %393 = vmatprep.subr.bf16.mxu0 0
      %394 = vmatpush1.bf16.msra.mxu0 %v373
      %395 = vmatprep.subr.bf16.mxu0 0
      %396 = vmatpush1.bf16.msra.mxu0 %v374
      %397 = vmatprep.subr.bf16.mxu0 0
      %398 = vmatpush1.bf16.msra.mxu0 %v375
      %399 = vmatprep.subr.bf16.mxu0 0
      %400 = vmatpush1.bf16.msra.mxu0 %v376
      %401 = vmatprep.subr.bf16.mxu0 0
      %402 = vmatpush1.bf16.msra.mxu0 0
      %403 = vmatprep.subr.bf16.mxu0 0
      %404 = vmatpush1.bf16.msra.mxu0 0
      %405 = vmatprep.subr.bf16.mxu0 0
      %406 = vmatpush1.bf16.msra.mxu0 0
      %407 = vmatprep.subr.bf16.mxu0 0
      %408 = vmatpush1.bf16.msra.mxu0 0
      %409 = vmatprep.subr.bf16.mxu0 0
      %410 = vmatpush1.bf16.msra.mxu0 0
      %411 = vmatprep.subr.bf16.mxu0 0
      %412 = vmatpush1.bf16.msra.mxu0 0
      %413 = vmatprep.subr.bf16.mxu0 0
      %414 = vmatpush1.bf16.msra.mxu0 0
      %415 = vmatprep.subr.bf16.mxu0 0
      %416 = vmatpush1.bf16.msra.mxu0 0
      %417 = vmatprep.mubr.bf16.mxu0 0
      %418 = vmatmul.mubr.bf16.gmra.mrb[0].mxu0 %v313
      %v419 = vpop.f32.mrb[0].mxu0
      %v420 = vadd.f32 %v335, %v419
      %v421 = vpop.f32.mrb[0].mxu0
      %v422 = vpop.f32.mrb[0].mxu0
      %v423 = vadd.f32 %v335, %v422
      %v424 = vpop.f32.mrb[0].mxu0
      %425 = vdwg.mxu0
      %426 = vst [vmem:[#allocation15] sm:$0xff] %v420
      %427 = vst [vmem:[#allocation15 + $0x8] sm:$0xff] %v423
    $region69: #{tpu_custom_call.1} parent=1 // pred_fallthru
      _
    // Predicated region
    $region70: #{tpu_custom_call.1} parent=1 // pred_check
      _
    $region71: #{tpu_custom_call.1} parent=1 // pred_check_branch
      %429 = sbr.rel (0) target = $region73
    $region72: #{tpu_custom_call.1} parent=1 // pred_region
      %s431 = ssub.s32 256, 256
      %432 = vsyncadd [#allocation5], %s431
      %s433 = sshll.u32 [#allocation15], 4
      %s434 = int_to_ptr.vmem [resolvable:$true] %s433
      %439 = dma.vmem_to_hbm [thread:$0]  %s434, 256, %s7, [#allocation5], 128, 128, 8
    $region73: #{tpu_custom_call.1} parent=1 // pred_fallthru
      _
    // Predicated region
    $region74: #{tpu_custom_call.1} parent=1 // pred_check
      _
    $region75: #{tpu_custom_call.1} parent=1 // pred_check_branch
      %441 = sbr.rel (0) target = $region77
    $region76: #{tpu_custom_call.1} parent=1 // pred_region
      %442 = dma.done [#allocation5], 256
    $region77: #{tpu_custom_call.1} parent=1 // pred_fallthru
      _
    %443 = vsyncpa [#allocation4], 1
    %444 = vsyncpa [#allocation7], 1
    %445 = vsyncpa [#allocation10], 1
    %446 = vsyncpa [#allocation13], 1
    %447 = vsyncpa [#allocation5], 1

</llo_original>
